<compile_context>
chip_gen: v5e
topology: v5e:2x2
jax: 0.10.0
libtpu: 0.0.40
codegen_flags: <defaults>
</compile_context>

<pallas_src>
import jax
import jax.numpy as jnp
from jax.experimental import pallas as pl
from jax.experimental.pallas import tpu as pltpu


# ----------------------------------------------------------------------------
# Pallas kernels (factories close over Python-float scalars -> jaxpr literals)
# ----------------------------------------------------------------------------

def _make_fused_kernel(factor):
    """Fused per-channel affine (brightness+normalize, folded) + contrast.

    Block shapes: x/o = (TB, CHW), scale/shift = (1, CHW).  Each row is one
    image, so the per-row mean (axis=-1) is the per-image mean.  All math in
    float32, cast on store.
    """
    factor = float(factor)

    def kernel(x_ref, scale_ref, shift_ref, o_ref):
        x = x_ref[...].astype(jnp.float32)            # (TB, CHW)
        s = x * scale_ref[...] + shift_ref[...]       # broadcast (1, CHW) over rows
        m = jnp.mean(s, axis=-1, keepdims=True)       # per-image mean, f32 accumulation
        o_ref[...] = ((s - m) * factor + m).astype(o_ref.dtype)

    return kernel


def _make_affine_kernel(gain, bias):
    """Elementwise affine y = x*gain + bias with static scalar constants."""
    gain = float(gain)
    bias = float(bias)

    def kernel(x_ref, o_ref):
        x = x_ref[...].astype(jnp.float32)
        o_ref[...] = (x * gain + bias).astype(o_ref.dtype)

    return kernel


# ----------------------------------------------------------------------------
# pallas_call wrappers
# ----------------------------------------------------------------------------

_VMEM_LIMIT = 32 * 1024 * 1024   # safe on v5e (scoped 16 default), v6e, v7x (64 phys)
_TARGET_BLOCK_BYTES = 2 << 20    # ~2 MiB per in/out block -> ~8 MiB double-buffered


def _compiler_params():
    return pltpu.CompilerParams(
        dimension_semantics=("parallel",),
        vmem_limit_bytes=_VMEM_LIMIT,
    )


def _choose_tb(n, row_bytes):
    """Rows (images) per block: ~2 MiB blocks, sublane-legal (mult of 8 or == N)."""
    tb = max(1, _TARGET_BLOCK_BYTES // max(row_bytes, 1))
    if tb >= n:
        return n                      # full-dim block is always legal
    tb = max(8, (tb // 8) * 8)        # keep sublane dim a multiple of 8
    return min(tb, n)


def _fused_pallas_call(x2, scale_row, shift_row, factor):
    """x2: (N, CHW); scale_row/shift_row: (1, CHW) f32; one image per row."""
    N, CHW = x2.shape
    tb = _choose_tb(N, CHW * x2.dtype.itemsize)
    grid = (pl.cdiv(N, tb),)
    return pl.pallas_call(
        _make_fused_kernel(factor),
        out_shape=jax.ShapeDtypeStruct((N, CHW), x2.dtype),
        grid_spec=pltpu.PrefetchScalarGridSpec(
            num_scalar_prefetch=0,
            grid=grid,
            in_specs=[
                pl.BlockSpec((tb, CHW), lambda i: (i, 0)),
                pl.BlockSpec((1, CHW), lambda i: (0, 0)),   # same tiny block every step
                pl.BlockSpec((1, CHW), lambda i: (0, 0)),
            ],
            out_specs=pl.BlockSpec((tb, CHW), lambda i: (i, 0)),
        ),
        compiler_params=_compiler_params(),
    )(x2, scale_row, shift_row)


def _affine_pallas_call(x2, gain, bias):
    N, CHW = x2.shape
    tb = _choose_tb(N, CHW * x2.dtype.itemsize)
    grid = (pl.cdiv(N, tb),)
    return pl.pallas_call(
        _make_affine_kernel(gain, bias),
        out_shape=jax.ShapeDtypeStruct((N, CHW), x2.dtype),
        grid_spec=pltpu.PrefetchScalarGridSpec(
            num_scalar_prefetch=0,
            grid=grid,
            in_specs=[pl.BlockSpec((tb, CHW), lambda i: (i, 0))],
            out_specs=pl.BlockSpec((tb, CHW), lambda i: (i, 0)),
        ),
        compiler_params=_compiler_params(),
    )(x2)


def _flatten(x):
    N, C, H, W = x.shape
    return x.reshape(N, C * H * W), (N, C, H, W)


# ----------------------------------------------------------------------------
# Transform objects (Pallas-backed callables with fusion metadata)
# ----------------------------------------------------------------------------

class AffineTransform:
    """Elementwise y = x*gain + bias.  Carries (gain, bias) so Augmentations
    can fold it into a following fused transform instead of a separate call."""

    def __init__(self, gain, bias):
        self.gain = float(gain)
        self.bias = float(bias)

    def __call__(self, x):
        x2, shape = _flatten(x)
        return _affine_pallas_call(x2, self.gain, self.bias).reshape(shape)


class FusedBrightnessNormalizeContrast:
    """brightness (x*gain+bias) -> per-channel normalize -> contrast, one kernel."""

    def __init__(self, gain, bias, mean, std, factor):
        self.gain = float(gain)
        self.bias = float(bias)
        self.mean = [float(m) for m in mean]
        self.std = [float(s) for s in std]
        self.factor = float(factor)

    def _scale_shift_rows(self, C, HW, pre_gain, pre_bias):
        mean_f = jnp.asarray(self.mean, jnp.float32)
        std_f = jnp.asarray(self.std, jnp.float32)
        scale_c = self.gain / std_f                       # (C,)
        shift_c = (self.bias - mean_f) / std_f            # (C,)
        # Fold an optional preceding elementwise affine: x' = x*g0 + b0.
        scale_c = scale_c * float(pre_gain)
        shift_c = shift_c + scale_c / max(float(pre_gain), 1e-38) * 0.0 \
            if False else float(pre_bias) * (self.gain / std_f) + shift_c
        # Pre-broadcast to lane-dense (1, C*HW) rows (tiny, DMA'd once per step).
        scale_row = jnp.repeat(scale_c, HW).reshape(1, C * HW)
        shift_row = jnp.repeat(shift_c, HW).reshape(1, C * HW)
        return scale_row, shift_row

    def apply(self, x, pre_gain=1.0, pre_bias=0.0):
        N, C, H, W = x.shape
        HW = H * W
        x2 = x.reshape(N, C * HW)
        scale_row, shift_row = self._scale_shift_rows(C, HW, pre_gain, pre_bias)
        out = _fused_pallas_call(x2, scale_row, shift_row, self.factor)
        return out.reshape(N, C, H, W)

    def __call__(self, x):
        return self.apply(x)


# ----------------------------------------------------------------------------
# Augmentations: same forward semantics as the PyTorch module, plus affine
# folding so composed lists minimize pallas_calls (each extra call is a full
# HBM read+write of the tensor).
# ----------------------------------------------------------------------------

class Augmentations:
    def __init__(self, tansforms=()):            # (sic) name matches PyTorch signature
        self.transforms = list(tansforms)

    def __call__(self, x):
        pending = None  # composed (gain, bias) of consecutive AffineTransforms
        for f in self.transforms:
            if isinstance(f, AffineTransform):
                if pending is None:
                    pending = (f.gain, f.bias)
                else:
                    g0, b0 = pending
                    pending = (g0 * f.gain, b0 * f.gain + f.bias)
            elif isinstance(f, FusedBrightnessNormalizeContrast) and pending is not None:
                x = f.apply(x, *pending)          # fold affine -> single pallas_call
                pending = None
            else:
                if pending is not None:           # flush before an opaque transform
                    x2, shape = _flatten(x)
                    x = _affine_pallas_call(x2, *pending).reshape(shape)
                    pending = None
                x = f(x)
        if pending is not None:
            x2, shape = _flatten(x)
            x = _affine_pallas_call(x2, *pending).reshape(shape)
        return x


# ----------------------------------------------------------------------------
# Demo + correctness check
# ----------------------------------------------------------------------------

if __name__ == "__main__":
    key = jax.random.PRNGKey(0)
    N, C, H, W = 2, 4, 16, 16
    x = jax.random.normal(key, (N, C, H, W), dtype=jnp.float32)

    ch_mean = [0.485, 0.456, 0.406, 0.5]
    ch_std = [0.229, 0.224, 0.225, 0.25]
    gain, bias, factor = 1.2, 0.1, 1.5

    # Pure-JAX reference for brightness -> normalize -> contrast.
    def pipeline_ref(z):
        r = z * gain + bias
        mean_r = jnp.asarray(ch_mean, jnp.float32).reshape(1, C, 1, 1)
        std_r = jnp.asarray(ch_std, jnp.float32).reshape(1, C, 1, 1)
        r = (r - mean_r) / std_r
        m = jnp.mean(r, axis=(1, 2, 3), keepdims=True)
        return (r - m) * factor + m

    # Case 1: empty transform list -> identity (exactly as in PyTorch forward).
    aug_empty = Augmentations([])
    y_empty = jax.block_until_ready(aug_empty(x))
    assert jnp.array_equal(y_empty, x)

    # Case 2: the three logical transforms fused into a single Pallas kernel.
    fused = FusedBrightnessNormalizeContrast(gain, bias, ch_mean, ch_std, factor)
    aug = Augmentations([fused])
    y = jax.block_until_ready(aug(x))
    ref = pipeline_ref(x)
    assert y.shape == (N, C, H, W) and y.dtype == jnp.float32
    assert jnp.allclose(y, ref, rtol=1e-5, atol=1e-4), "fused pipeline mismatch vs reference"

    # Case 3: [affine, fused] -> folded into ONE pallas_call by Augmentations.
    pre = AffineTransform(2.0, -0.5)
    aug2 = Augmentations([pre, fused])
    y2 = jax.block_until_ready(aug2(x))
    ref2 = pipeline_ref(x * 2.0 - 0.5)
    assert jnp.allclose(y2, ref2, rtol=1e-5, atol=1e-4), "composed pipeline mismatch vs reference"

    # Case 4: standalone affine list (flush-at-end path).
    aug3 = Augmentations([AffineTransform(1.5, 0.25)])
    y3 = jax.block_until_ready(aug3(x))
    assert jnp.allclose(y3, x * 1.5 + 0.25, rtol=1e-6, atol=1e-6), "affine mismatch"

    print("KERNEL_OK")
</pallas_src>

<mosaic_0001>
module attributes {stable_mosaic.version = 11 : i64} {
  func.func @kernel(%arg0: i32, %arg1: memref<2x1024xf32, #tpu.memory_space<vmem>>, %arg2: memref<1x1024xf32, #tpu.memory_space<vmem>>, %arg3: memref<1x1024xf32, #tpu.memory_space<vmem>>, %arg4: memref<2x1024xf32, #tpu.memory_space<vmem>>) attributes {dimension_semantics = [#tpu.dimension_semantics<parallel>], iteration_bounds = array<i64: 1>, scalar_prefetch = 0 : i64, scratch_operands = 0 : i64, tpu.core_type = #tpu.core_type<tc>, window_params = [{transform_indices = @transform_0, window_bounds = array<i64: 2, 1024>}, {pipeline_mode = #tpu.pipeline_mode<synchronous>, transform_indices = @transform_1, window_bounds = array<i64: 1, 1024>}, {pipeline_mode = #tpu.pipeline_mode<synchronous>, transform_indices = @transform_2, window_bounds = array<i64: 1, 1024>}, {transform_indices = @transform_3, window_bounds = array<i64: 2, 1024>}]} {
    %c0 = arith.constant 0 : index
    %c0_0 = arith.constant 0 : index
    %0 = vector.load %arg1[%c0, %c0_0] : memref<2x1024xf32, #tpu.memory_space<vmem>>, vector<2x1024xf32>
    %c0_1 = arith.constant 0 : index
    %c0_2 = arith.constant 0 : index
    %1 = vector.load %arg2[%c0_1, %c0_2] : memref<1x1024xf32, #tpu.memory_space<vmem>>, vector<1x1024xf32>
    %2 = vector.broadcast %1 : vector<1x1024xf32> to vector<2x1024xf32>
    %3 = arith.mulf %0, %2 : vector<2x1024xf32>
    %c0_3 = arith.constant 0 : index
    %c0_4 = arith.constant 0 : index
    %4 = vector.load %arg3[%c0_3, %c0_4] : memref<1x1024xf32, #tpu.memory_space<vmem>>, vector<1x1024xf32>
    %5 = vector.broadcast %4 : vector<1x1024xf32> to vector<2x1024xf32>
    %6 = arith.addf %3, %5 : vector<2x1024xf32>
    %cst = arith.constant dense<0.000000e+00> : vector<2xf32>
    %7 = vector.multi_reduction <add>, %6, %cst [1] : vector<2x1024xf32> to vector<2xf32>
    %8 = vector.shape_cast %7 : vector<2xf32> to vector<2x1xf32>
    %cst_5 = arith.constant 1.024000e+03 : f32
    %9 = vector.broadcast %cst_5 : f32 to vector<2x1xf32>
    %10 = arith.divf %8, %9 : vector<2x1xf32>
    %11 = vector.broadcast %10 : vector<2x1xf32> to vector<2x1024xf32>
    %12 = arith.subf %6, %11 : vector<2x1024xf32>
    %cst_6 = arith.constant 1.500000e+00 : f32
    %13 = vector.broadcast %cst_6 : f32 to vector<2x1024xf32>
    %14 = arith.mulf %12, %13 : vector<2x1024xf32>
    %15 = vector.broadcast %10 : vector<2x1xf32> to vector<2x1024xf32>
    %16 = arith.addf %14, %15 : vector<2x1024xf32>
    %c0_7 = arith.constant 0 : index
    %c0_8 = arith.constant 0 : index
    %17 = vector.load %arg4[%c0_7, %c0_8] : memref<2x1024xf32, #tpu.memory_space<vmem>>, vector<2x1024xf32>
    tpu.vector_store %arg4[%c0_7, %c0_8], %16 {strides = array<i32>} : memref<2x1024xf32, #tpu.memory_space<vmem>>, vector<2x1024xf32>,
    return
  }
  func.func @transform_0(%arg0: i32) -> (i32, i32) {
    %c0_i32 = arith.constant 0 : i32
    %c0_i32_0 = arith.constant 0 : i32
    return %arg0, %c0_i32 : i32, i32
  }
  func.func @transform_1(%arg0: i32) -> (i32, i32) {
    %c0_i32 = arith.constant 0 : i32
    %c0_i32_0 = arith.constant 0 : i32
    %c0_i32_1 = arith.constant 0 : i32
    return %c0_i32, %c0_i32_0 : i32, i32
  }
  func.func @transform_2(%arg0: i32) -> (i32, i32) {
    %c0_i32 = arith.constant 0 : i32
    %c0_i32_0 = arith.constant 0 : i32
    %c0_i32_1 = arith.constant 0 : i32
    return %c0_i32, %c0_i32_0 : i32, i32
  }
  func.func @transform_3(%arg0: i32) -> (i32, i32) {
    %c0_i32 = arith.constant 0 : i32
    %c0_i32_0 = arith.constant 0 : i32
    return %arg0, %c0_i32 : i32, i32
  }
}

</mosaic_0001>

<llo_original>
// kernel: tpu_custom_call.1
$region0: #{tpu_custom_call.1}
  #allocation0 [shape = 'u32[]', space=smem, size = 0x4, offset = 0x4, fixed_abs, tag = 'smem constant byte address 0x4 - core index']
  #allocation1 [shape = 'u32[72,128]{1,0:T(1,128)}', space=vmem, size = 0x9000, scoped, tag = 'internal scratch']
  %s0 = inlined_call_operand.hbm [shape: f32[2,1024], index: 0, kind: input, shape index: {}]
  %s1 = inlined_call_operand.hbm [shape: f32[1,1024], index: 1, kind: input, shape index: {}]
  %s2 = inlined_call_operand.hbm [shape: f32[1,1024], index: 2, kind: input, shape index: {}]
  %s3 = inlined_call_operand.hbm [shape: f32[2,1024], index: 3, kind: output, shape index: {}]
  %s4 = sld [smem:[#allocation0]]
  $region34: #{tpu_custom_call.1} parent=0
    _
  %s6 = ssub.s32 1, %s4
  %s7 = scalar_select 0, %s6, %s4
  $region1: #{tpu_custom_call.1} parent=0
    #allocation2 [shape = 'u8[8192]{0}', space=vmem, size = 0x2000, scoped, tag = 'input window, operand 0, single buffered']
    #allocation3 [shape = 's32[1]{0}', space=sflag, size = 0x4, scoped, tag = 'scoped memory for tpu_custom_call.1']
    #allocation4 [shape = 's32[1]{0}', space=sflag, size = 0x4, scoped, tag = 'scoped memory for tpu_custom_call.1']
    #allocation5 [shape = 'u8[4096]{0}', space=vmem, size = 0x1000, scoped, tag = 'input window, operand 1, single buffered']
    #allocation6 [shape = 's32[1]{0}', space=sflag, size = 0x4, scoped, tag = 'scoped memory for tpu_custom_call.1']
    #allocation7 [shape = 'u8[4096]{0}', space=vmem, size = 0x1000, scoped, tag = 'input window, operand 2, single buffered']
    #allocation8 [shape = 'u8[8192]{0}', space=vmem, size = 0x2000, scoped, tag = 'output window, operand 0, single buffered']
    %8 = vsyncpa [#allocation3], 0
    %9 = vsyncpa [#allocation6], 0
    %10 = vsyncpa [#allocation4], 0
    // Predicated region
    $region2: #{tpu_custom_call.1} parent=1 // pred_check
      _
    $region3: #{tpu_custom_call.1} parent=1 // pred_check_branch
      %12 = sbr.rel (0) target = $region5
    $region4: #{tpu_custom_call.1} parent=1 // pred_region
      %14 = vsyncadd [#allocation3], 0
      %s16 = sshll.u32 %s0, 4
      %s17 = int_to_ptr.hbm [resolvable:$true] %s16
      %s18 = sshll.u32 [#allocation2], 4
      %s19 = int_to_ptr.vmem [resolvable:$true] %s18
      %21 = dma.hbm_to_vmem [thread:$0]  %s17, 256, %s19, [#allocation3]
    $region5: #{tpu_custom_call.1} parent=1 // pred_fallthru
      _
    // Predicated region
    $region6: #{tpu_custom_call.1} parent=1 // pred_check
      _
    $region7: #{tpu_custom_call.1} parent=1 // pred_check_branch
      %23 = sbr.rel (0) target = $region9
    $region8: #{tpu_custom_call.1} parent=1 // pred_region
      %25 = vsyncadd [#allocation6], 0
      %s27 = sshll.u32 %s1, 4
      %s28 = int_to_ptr.hbm [resolvable:$true] %s27
      %s29 = sshll.u32 [#allocation5], 4
      %s30 = int_to_ptr.vmem [resolvable:$true] %s29
      %32 = dma.hbm_to_vmem [thread:$0]  %s28, 128, %s30, [#allocation6]
    $region9: #{tpu_custom_call.1} parent=1 // pred_fallthru
      _
    // Predicated region
    $region10: #{tpu_custom_call.1} parent=1 // pred_check
      _
    $region11: #{tpu_custom_call.1} parent=1 // pred_check_branch
      %34 = sbr.rel (0) target = $region13
    $region12: #{tpu_custom_call.1} parent=1 // pred_region
      %36 = vsyncadd [#allocation6], 0
      %s38 = sshll.u32 %s2, 4
      %s39 = int_to_ptr.hbm [resolvable:$true] %s38
      %s40 = sshll.u32 [#allocation7], 4
      %s41 = int_to_ptr.vmem [resolvable:$true] %s40
      %43 = dma.hbm_to_vmem [thread:$0]  %s39, 128, %s41, [#allocation6]
    $region13: #{tpu_custom_call.1} parent=1 // pred_fallthru
      _
    // Predicated region
    $region14: #{tpu_custom_call.1} parent=1 // pred_check
      _
    $region15: #{tpu_custom_call.1} parent=1 // pred_check_branch
      %45 = sbr.rel (0) target = $region17
    $region16: #{tpu_custom_call.1} parent=1 // pred_region
      %47 = dma.done [#allocation3], 256
    $region17: #{tpu_custom_call.1} parent=1 // pred_fallthru
      _
    // Predicated region
    $region18: #{tpu_custom_call.1} parent=1 // pred_check
      _
    $region19: #{tpu_custom_call.1} parent=1 // pred_check_branch
      %49 = sbr.rel (0) target = $region21
    $region20: #{tpu_custom_call.1} parent=1 // pred_region
      %51 = dma.done [#allocation6], 128
    $region21: #{tpu_custom_call.1} parent=1 // pred_fallthru
      _
    // Predicated region
    $region22: #{tpu_custom_call.1} parent=1 // pred_check
      _
    $region23: #{tpu_custom_call.1} parent=1 // pred_check_branch
      %53 = sbr.rel (0) target = $region25
    $region24: #{tpu_custom_call.1} parent=1 // pred_region
      %55 = dma.done [#allocation6], 128
    $region25: #{tpu_custom_call.1} parent=1 // pred_fallthru
      _
    %v56 = vld [vmem:[#allocation2] sm:$0xff]
    %v57 = vld [vmem:[#allocation2 + $0x8] sm:$0xff]
    %v58 = vld [vmem:[#allocation5] sm:$0xff]
    %v60 = vperm.slane %v58, 0
    %v61 = vperm.slane %v58, 1
    %v62 = vperm.slane %v58, 2
    %v63 = vperm.slane %v58, 3
    %v64 = vperm.slane %v58, 4
    %v65 = vperm.slane %v58, 5
    %v66 = vperm.slane %v58, 6
    %v67 = vperm.slane %v58, 7
    %v68 = vrot.slane %v61, 6
    %v69 = vrot.slane %v62, 4
    %v70 = vrot.slane %v63, 2
    %v71 = vrot.slane %v65, 6
    %v72 = vrot.slane %v66, 4
    %v73 = vrot.slane %v67, 2
    %vm74 = vcmask 1041408
    %v75 = vsel %vm74, %v60, %v68
    %vm76 = vcmask 1045508
    %v77 = vsel %vm76, %v69, %v70
    %vm78 = vcmask 1043456
    %v79 = vsel %vm78, %v75, %v77
    %v80 = vsel %vm74, %v64, %v71
    %v81 = vsel %vm76, %v72, %v73
    %v82 = vsel %vm78, %v80, %v81
    %v85 = vmul.f32 %v56, %v79
    %v86 = vmul.f32 %v57, %v82
    %v87 = vld [vmem:[#allocation7] sm:$0xff]
    %v89 = vperm.slane %v87, 0
    %v90 = vperm.slane %v87, 1
    %v91 = vperm.slane %v87, 2
    %v92 = vperm.slane %v87, 3
    %v93 = vperm.slane %v87, 4
    %v94 = vperm.slane %v87, 5
    %v95 = vperm.slane %v87, 6
    %v96 = vperm.slane %v87, 7
    %v97 = vrot.slane %v90, 6
    %v98 = vrot.slane %v91, 4
    %v99 = vrot.slane %v92, 2
    %v100 = vrot.slane %v94, 6
    %v101 = vrot.slane %v95, 4
    %v102 = vrot.slane %v96, 2
    %v103 = vsel %vm74, %v89, %v97
    %v104 = vsel %vm76, %v98, %v99
    %v105 = vsel %vm78, %v103, %v104
    %v106 = vsel %vm74, %v93, %v100
    %v107 = vsel %vm76, %v101, %v102
    %v108 = vsel %vm78, %v106, %v107
    %v111 = vadd.f32 %v85, %v105
    %v112 = vadd.f32 %v86, %v108
    %115 = vst [vmem:[#allocation1] ss:$4 sm:$0xff] %v111
    %s116 = scalar_lea.vmem [#allocation1], 32
    %117 = vst [vmem:[%s116] ss:$4 sm:$0xff] %v112
    %v118 = vld.sshfl [vmem:[#allocation1] sm:$0xff pattern:$0x73625140]
    %v119 = vld.sshfl [vmem:[#allocation1 + $0x8] sm:$0xff pattern:$0x73625140]
    %v120 = vld.sshfl [vmem:[#allocation1 + $0x10] sm:$0xff pattern:$0x73625140]
    %v121 = vld.sshfl [vmem:[#allocation1 + $0x18] sm:$0xff pattern:$0x73625140]
    %v122 = vld.sshfl [vmem:[#allocation1 + $0x20] sm:$0xff pattern:$0x73625140]
    %v123 = vld.sshfl [vmem:[#allocation1 + $0x28] sm:$0xff pattern:$0x73625140]
    %v124 = vld.sshfl [vmem:[#allocation1 + $0x30] sm:$0xff pattern:$0x73625140]
    %v125 = vld.sshfl [vmem:[#allocation1 + $0x38] sm:$0xff pattern:$0x73625140]
    %v134 = vsel %vm74, %v118, 0.0
    %v135 = vsel %vm74, %v119, 0.0
    %v136 = vadd.f32 %v134, %v135
    %v137 = vsel %vm74, %v120, 0.0
    %v138 = vadd.f32 %v136, %v137
    %v139 = vsel %vm74, %v121, 0.0
    %v140 = vadd.f32 %v138, %v139
    %v141 = vsel %vm74, %v122, 0.0
    %v142 = vadd.f32 %v140, %v141
    %v143 = vsel %vm74, %v123, 0.0
    %v144 = vadd.f32 %v142, %v143
    %v145 = vsel %vm74, %v124, 0.0
    %v146 = vadd.f32 %v144, %v145
    %v147 = vsel %vm74, %v125, 0.0
    %v148 = vadd.f32 %v146, %v147
    %149 = vadd.xlane.f32.xlu0 %v148
    %v150 = vpop.xlane.xlu0 %149
    %v151 = vrcp.pop 1024.0
    %v152 = vmul.f32 1024.0, %v151
    %v153 = vsub.f32 1.0, %v152
    %v154 = vmul.f32 %v151, %v153
    %v155 = vadd.f32 %v151, %v154
    %vm156 = vweird.f32 %v151
    %v157 = vsel %vm156, %v151, %v155
    %v158 = vmul.f32 %v150, %v157
    %v161 = vunpack.c.l.s4 269488144
    %v162 = vunpack.c.0.s8 %v161
    %v163 = vperm.slane %v158, %v162
    %v165 = vsub.f32 %v111, %v163
    %v166 = vsub.f32 %v112, %v163
    %v167 = vmul.f32 %v165, 1.5
    %v168 = vmul.f32 %v166, 1.5
    %v169 = vadd.f32 %v167, %v163
    %v170 = vadd.f32 %v168, %v163
    %171 = vst [vmem:[#allocation8] sm:$0xff] %v169
    %172 = vst [vmem:[#allocation8 + $0x8] sm:$0xff] %v170
    // Predicated region
    $region26: #{tpu_custom_call.1} parent=1 // pred_check
      _
    $region27: #{tpu_custom_call.1} parent=1 // pred_check_branch
      %174 = sbr.rel (0) target = $region29
    $region28: #{tpu_custom_call.1} parent=1 // pred_region
      %176 = vsyncadd [#allocation4], 0
      %s178 = sshll.u32 [#allocation8], 4
      %s179 = int_to_ptr.vmem [resolvable:$true] %s178
      %s180 = sshll.u32 %s3, 4
      %s181 = int_to_ptr.hbm [resolvable:$true] %s180
      %183 = dma.vmem_to_hbm [thread:$0]  %s179, 256, %s181, [#allocation4]
    $region29: #{tpu_custom_call.1} parent=1 // pred_fallthru
      _
    // Predicated region
    $region30: #{tpu_custom_call.1} parent=1 // pred_check
      _
    $region31: #{tpu_custom_call.1} parent=1 // pred_check_branch
      %185 = sbr.rel (0) target = $region33
    $region32: #{tpu_custom_call.1} parent=1 // pred_region
      %187 = dma.done [#allocation4], 256
    $region33: #{tpu_custom_call.1} parent=1 // pred_fallthru
      _
    %188 = vsyncpa [#allocation3], 1
    %189 = vsyncpa [#allocation6], 1
    %190 = vsyncpa [#allocation4], 1

</llo_original>
